<compile_context>
chip_gen: v5e
topology: v5e:2x2
jax: 0.10.0
libtpu: 0.0.40
codegen_flags: <defaults>
</compile_context>

<pallas_src>
import functools
import math

import jax
import jax.numpy as jnp
from jax import lax
from jax.experimental import pallas as pl
from jax.experimental.pallas import tpu as pltpu

# ---------------- synthetic "bert-base"-like config (small) ----------------
VOCAB = 100
HIDDEN = 128
NUM_HEADS = 2
HEAD_DIM = HIDDEN // NUM_HEADS
INTERMEDIATE = 256
NUM_LAYERS = 2
MAX_POS = 32
LN_EPS = 1e-12

_BF16 = jnp.bfloat16


def _row_tile(m, max_tile=256):
    """Largest row tile <= max_tile that divides m (multiple of 8 when m is large)."""
    if m <= max_tile:
        return m
    for t in range(max_tile, 7, -8):
        if m % t == 0:
            return t
    return m


# ----------------------------- Pallas kernels ------------------------------
def _dense_kernel(x_ref, w_ref, b_ref, o_ref, *, activation):
    # y = x @ w + b (bf16 operands, fp32 accumulation), optional activation in fp32.
    y = jnp.dot(x_ref[...], w_ref[...], preferred_element_type=jnp.float32)
    y = y + b_ref[...]
    if activation == "gelu":
        # tanh-approximate GELU; HF BERT default is exact erf-GELU (slightly different).
        y = 0.5 * y * (1.0 + jnp.tanh(0.7978845608028654 * (y + 0.044715 * y * y * y)))
    elif activation == "tanh":
        y = jnp.tanh(y)
    o_ref[...] = y.astype(o_ref.dtype)


def dense(x, w, b, activation="none", out_dtype=_BF16):
    M, K = x.shape
    N = w.shape[1]
    tm = _row_tile(M)
    return pl.pallas_call(
        functools.partial(_dense_kernel, activation=activation),
        out_shape=jax.ShapeDtypeStruct((M, N), out_dtype),
        grid=(M // tm,),
        in_specs=[pl.BlockSpec((tm, K), lambda i: (i, 0)),
                  pl.BlockSpec((K, N), lambda i: (0, 0)),
                  pl.BlockSpec((1, N), lambda i: (0, 0))],
        out_specs=pl.BlockSpec((tm, N), lambda i: (i, 0)),
        compiler_params=pltpu.CompilerParams(dimension_semantics=("parallel",)),
    )(x, w, b)  # b is stored as (1, N) fp32


def _dense_res_ln_kernel(x_ref, w_ref, b_ref, r_ref, g_ref, bb_ref, o_ref, *, eps):
    # Fused: (x @ w + b + residual) -> LayerNorm(gamma, beta). LN math in fp32.
    y = jnp.dot(x_ref[...], w_ref[...], preferred_element_type=jnp.float32)
    y = y + b_ref[...] + r_ref[...].astype(jnp.float32)
    mu = jnp.mean(y, axis=-1, keepdims=True)
    var = jnp.mean(jnp.square(y - mu), axis=-1, keepdims=True)
    yn = (y - mu) * lax.rsqrt(var + eps)
    o_ref[...] = (yn * g_ref[...] + bb_ref[...]).astype(o_ref.dtype)


def dense_residual_layernorm(x, w, b, residual, gamma, beta, out_dtype=_BF16):
    M, K = x.shape
    N = w.shape[1]
    tm = _row_tile(M)
    return pl.pallas_call(
        functools.partial(_dense_res_ln_kernel, eps=LN_EPS),
        out_shape=jax.ShapeDtypeStruct((M, N), out_dtype),
        grid=(M // tm,),
        in_specs=[pl.BlockSpec((tm, K), lambda i: (i, 0)),
                  pl.BlockSpec((K, N), lambda i: (0, 0)),
                  pl.BlockSpec((1, N), lambda i: (0, 0)),
                  pl.BlockSpec((tm, N), lambda i: (i, 0)),
                  pl.BlockSpec((1, N), lambda i: (0, 0)),
                  pl.BlockSpec((1, N), lambda i: (0, 0))],
        out_specs=pl.BlockSpec((tm, N), lambda i: (i, 0)),
        compiler_params=pltpu.CompilerParams(dimension_semantics=("parallel",)),
    )(x, w, b, residual, gamma, beta)


def _ln_kernel(x_ref, g_ref, b_ref, o_ref, *, eps):
    x = x_ref[...].astype(jnp.float32)
    mu = jnp.mean(x, axis=-1, keepdims=True)
    var = jnp.mean(jnp.square(x - mu), axis=-1, keepdims=True)
    y = (x - mu) * lax.rsqrt(var + eps)
    o_ref[...] = (y * g_ref[...] + b_ref[...]).astype(o_ref.dtype)


def layernorm(x, gamma, beta, out_dtype=_BF16):
    M, N = x.shape
    tm = _row_tile(M)
    return pl.pallas_call(
        functools.partial(_ln_kernel, eps=LN_EPS),
        out_shape=jax.ShapeDtypeStruct((M, N), out_dtype),
        grid=(M // tm,),
        in_specs=[pl.BlockSpec((tm, N), lambda i: (i, 0)),
                  pl.BlockSpec((1, N), lambda i: (0, 0)),
                  pl.BlockSpec((1, N), lambda i: (0, 0))],
        out_specs=pl.BlockSpec((tm, N), lambda i: (i, 0)),
        compiler_params=pltpu.CompilerParams(dimension_semantics=("parallel",)),
    )(x, gamma, beta)


def _attn_kernel(qkv_ref, bias_ref, o_ref, *, scale, num_heads, head_dim, hidden):
    # qkv_ref: (1, S, 3H) lane-dense block (Q | K | V); o_ref: (1, S, H) lane-dense.
    bias = bias_ref[0]                                                 # (1, S) fp32, precomputed
    for h in range(num_heads):                                         # unrolled at trace time
        q = qkv_ref[0, :, pl.ds(h * head_dim, head_dim)]               # (S, Dh) bf16
        k = qkv_ref[0, :, pl.ds(hidden + h * head_dim, head_dim)]      # (S, Dh) bf16
        v = qkv_ref[0, :, pl.ds(2 * hidden + h * head_dim, head_dim)]  # (S, Dh) bf16
        # Contract on the last axes directly -> no materialized transpose of k.
        s = lax.dot_general(q, k, (((1,), (1,)), ((), ())),
                            preferred_element_type=jnp.float32) * scale
        s = s + bias                                                   # (S, S) + (1, S)
        s = s - jnp.max(s, axis=-1, keepdims=True)
        e = jnp.exp(s)
        p = e * pl.reciprocal(jnp.sum(e, axis=-1, keepdims=True), approx=True)
        ctx = jnp.dot(p.astype(v.dtype), v, preferred_element_type=jnp.float32)
        o_ref[0, :, pl.ds(h * head_dim, head_dim)] = ctx.astype(o_ref.dtype)


def attention(qkv, bias):
    B, S, H3 = qkv.shape
    H = H3 // 3
    return pl.pallas_call(
        functools.partial(_attn_kernel, scale=1.0 / math.sqrt(HEAD_DIM),
                          num_heads=NUM_HEADS, head_dim=HEAD_DIM, hidden=H),
        out_shape=jax.ShapeDtypeStruct((B, S, H), _BF16),
        grid=(B,),
        in_specs=[pl.BlockSpec((1, S, H3), lambda b: (b, 0, 0)),
                  pl.BlockSpec((1, 1, S), lambda b: (b, 0, 0))],
        out_specs=pl.BlockSpec((1, S, H), lambda b: (b, 0, 0)),
        compiler_params=pltpu.CompilerParams(dimension_semantics=("parallel",)),
    )(qkv, bias)


def _gather_kernel(pos_ref, x_ref, o_ref):
    # x_ref already holds the single (1, 1, H) row selected by the data-dependent BlockSpec.
    b = pl.program_id(0)
    o_ref[pl.ds(b, 1), :] = x_ref[0]


def gather_positions(seq_out, pos):
    # Equivalent of outputs[0][arange(B), pos]: DMA exactly one (1, H) row per batch element.
    B, S, H = seq_out.shape
    return pl.pallas_call(
        _gather_kernel,
        out_shape=jax.ShapeDtypeStruct((B, H), seq_out.dtype),
        grid_spec=pltpu.PrefetchScalarGridSpec(
            num_scalar_prefetch=1,
            grid=(B,),
            in_specs=[pl.BlockSpec((1, 1, H), lambda b, pos_ref: (b, pos_ref[b], 0))],
            out_specs=pl.BlockSpec((B, H), lambda b, pos_ref: (0, 0)),
        ),
    )(pos.astype(jnp.int32), seq_out)


# ----------------------------- model (glue) ---------------------------------
def init_params(key):
    def nrm(k, shape, scale=0.02, dtype=_BF16):
        return (scale * jax.random.normal(k, shape, dtype=jnp.float32)).astype(dtype)

    keys = jax.random.split(key, 8 + NUM_LAYERS)
    params = {
        "word_emb": nrm(keys[0], (VOCAB, HIDDEN), dtype=jnp.float32),
        "pos_emb": nrm(keys[1], (MAX_POS, HIDDEN), dtype=jnp.float32),
        "tok_emb": nrm(keys[2], (2, HIDDEN), dtype=jnp.float32),
        "emb_ln_g": jnp.ones((1, HIDDEN), jnp.float32),
        "emb_ln_b": jnp.zeros((1, HIDDEN), jnp.float32),
        "pool_w": nrm(keys[3], (HIDDEN, HIDDEN)),
        "pool_b": jnp.zeros((1, HIDDEN), jnp.float32),
        "layers": [],
    }
    for li in range(NUM_LAYERS):
        lk = jax.random.split(keys[8 + li], 4)
        params["layers"].append({
            # fused Q | K | V projection weights (bf16 for the MXU), biases in fp32
            "w_qkv": nrm(lk[0], (HIDDEN, 3 * HIDDEN)),
            "b_qkv": jnp.zeros((1, 3 * HIDDEN), jnp.float32),
            "wo": nrm(lk[1], (HIDDEN, HIDDEN)), "bo": jnp.zeros((1, HIDDEN), jnp.float32),
            "ln1_g": jnp.ones((1, HIDDEN), jnp.float32), "ln1_b": jnp.zeros((1, HIDDEN), jnp.float32),
            "wi": nrm(lk[2], (HIDDEN, INTERMEDIATE)), "bi": jnp.zeros((1, INTERMEDIATE), jnp.float32),
            "wo2": nrm(lk[3], (INTERMEDIATE, HIDDEN)), "bo2": jnp.zeros((1, HIDDEN), jnp.float32),
            "ln2_g": jnp.ones((1, HIDDEN), jnp.float32), "ln2_b": jnp.zeros((1, HIDDEN), jnp.float32),
        })
    return params


def bert_layer(x, lp, bias, B, S):
    # x: (B*S, H) bf16
    qkv = dense(x, lp["w_qkv"], lp["b_qkv"])                       # (B*S, 3H) — fused QKV matmul
    ctx = attention(qkv.reshape(B, S, 3 * HIDDEN), bias)           # (B, S, H), heads sliced in-kernel
    ctx = ctx.reshape(B * S, HIDDEN)
    h = dense_residual_layernorm(ctx, lp["wo"], lp["bo"], x,
                                 lp["ln1_g"], lp["ln1_b"])         # attn-out proj + add&LN fused
    inter = dense(h, lp["wi"], lp["bi"], activation="gelu")        # (B*S, I)
    return dense_residual_layernorm(inter, lp["wo2"], lp["bo2"], h,
                                    lp["ln2_g"], lp["ln2_b"])      # FFN-out proj + add&LN fused


def bert_encode(params, word, mask):
    B, S = word.shape
    emb = (params["word_emb"][word]
           + params["pos_emb"][:S][None, :, :]
           + params["tok_emb"][0][None, None, :])                  # token_type_ids = 0, fp32
    x = layernorm(emb.reshape(B * S, HIDDEN), params["emb_ln_g"], params["emb_ln_b"])  # -> bf16

    # BERT extended attention mask, precomputed once per batch (hoisted out of the kernels).
    bias = ((1.0 - mask.astype(jnp.float32)) * (-10000.0)).reshape(B, 1, S)

    for lp in params["layers"]:
        x = bert_layer(x, lp, bias, B, S)

    seq_out = x.reshape(B, S, HIDDEN).astype(jnp.float32)          # outputs[0]
    cls = seq_out[:, 0, :].astype(_BF16)
    pooled = dense(cls, params["pool_w"], params["pool_b"],
                   activation="tanh", out_dtype=jnp.float32)       # outputs[1]
    return seq_out, pooled


def bert_sentence_encoder_forward(params, inputs, cat=True):
    """Mirrors BERTSentenceEncoder.forward."""
    seq_out, pooled = bert_encode(params, inputs["word"], inputs["mask"])
    if cat:
        h_state = gather_positions(seq_out, inputs["pos1"])        # outputs[0][arange(B), pos1]
        t_state = gather_positions(seq_out, inputs["pos2"])        # outputs[0][arange(B), pos2]
        return h_state, t_state, seq_out
    else:
        return pooled, seq_out


# ---------------------------------- main ------------------------------------
if __name__ == "__main__":
    key = jax.random.PRNGKey(0)
    pkey, wkey = jax.random.split(key)
    params = init_params(pkey)

    B, S = 2, 16
    word = jax.random.randint(wkey, (B, S), 1, VOCAB, dtype=jnp.int32)
    lengths = jnp.array([12, 9], dtype=jnp.int32)
    mask = (jnp.arange(S)[None, :] < lengths[:, None]).astype(jnp.int32)
    pos1 = jnp.array([3, 2], dtype=jnp.int32)
    pos2 = jnp.array([7, 5], dtype=jnp.int32)

    inputs = {"word": word, "mask": mask, "pos1": pos1, "pos2": pos2}

    h_state, t_state, seq_out = bert_sentence_encoder_forward(params, inputs, cat=True)
    jax.block_until_ready((h_state, t_state, seq_out))

    assert h_state.shape == (B, HIDDEN)
    assert t_state.shape == (B, HIDDEN)
    assert seq_out.shape == (B, S, HIDDEN)

    # sanity: gathered rows match the sequence output at pos1/pos2
    assert jnp.allclose(h_state, seq_out[jnp.arange(B), pos1], atol=1e-6)
    assert jnp.allclose(t_state, seq_out[jnp.arange(B), pos2], atol=1e-6)

    # also exercise the cat=False path (pooler output)
    pooled, seq_out2 = bert_sentence_encoder_forward(params, inputs, cat=False)
    jax.block_until_ready((pooled, seq_out2))
    assert pooled.shape == (B, HIDDEN)

    print("KERNEL_OK")
</pallas_src>

<mosaic_0001>
module attributes {stable_mosaic.version = 11 : i64} {
  func.func @_ln_kernel(%arg0: i32, %arg1: memref<32x128xf32, #tpu.memory_space<vmem>>, %arg2: memref<1x128xf32, #tpu.memory_space<vmem>>, %arg3: memref<1x128xf32, #tpu.memory_space<vmem>>, %arg4: memref<32x128xbf16, #tpu.memory_space<vmem>>) attributes {dimension_semantics = [#tpu.dimension_semantics<parallel>], iteration_bounds = array<i64: 1>, scalar_prefetch = 0 : i64, scratch_operands = 0 : i64, tpu.core_type = #tpu.core_type<tc>, window_params = [{transform_indices = @transform_0, window_bounds = array<i64: 32, 128>}, {pipeline_mode = #tpu.pipeline_mode<synchronous>, transform_indices = @transform_1, window_bounds = array<i64: 1, 128>}, {pipeline_mode = #tpu.pipeline_mode<synchronous>, transform_indices = @transform_2, window_bounds = array<i64: 1, 128>}, {transform_indices = @transform_3, window_bounds = array<i64: 32, 128>}]} {
    %c0 = arith.constant 0 : index
    %c0_0 = arith.constant 0 : index
    %0 = vector.load %arg1[%c0, %c0_0] : memref<32x128xf32, #tpu.memory_space<vmem>>, vector<32x128xf32>
    %cst = arith.constant dense<0.000000e+00> : vector<32xf32>
    %1 = vector.multi_reduction <add>, %0, %cst [1] : vector<32x128xf32> to vector<32xf32>
    %2 = vector.shape_cast %1 : vector<32xf32> to vector<32x1xf32>
    %cst_1 = arith.constant 1.280000e+02 : f32
    %3 = vector.broadcast %cst_1 : f32 to vector<32x1xf32>
    %4 = arith.divf %2, %3 : vector<32x1xf32>
    %5 = vector.broadcast %4 : vector<32x1xf32> to vector<32x128xf32>
    %6 = arith.subf %0, %5 : vector<32x128xf32>
    %7 = arith.mulf %6, %6 : vector<32x128xf32>
    %cst_2 = arith.constant dense<0.000000e+00> : vector<32xf32>
    %8 = vector.multi_reduction <add>, %7, %cst_2 [1] : vector<32x128xf32> to vector<32xf32>
    %9 = vector.shape_cast %8 : vector<32xf32> to vector<32x1xf32>
    %cst_3 = arith.constant 1.280000e+02 : f32
    %10 = vector.broadcast %cst_3 : f32 to vector<32x1xf32>
    %11 = arith.divf %9, %10 : vector<32x1xf32>
    %12 = vector.broadcast %4 : vector<32x1xf32> to vector<32x128xf32>
    %13 = arith.subf %0, %12 : vector<32x128xf32>
    %cst_4 = arith.constant 9.99999996E-13 : f32
    %14 = vector.broadcast %cst_4 : f32 to vector<32x1xf32>
    %15 = arith.addf %11, %14 : vector<32x1xf32>
    %16 = math.rsqrt %15 : vector<32x1xf32>
    %17 = vector.broadcast %16 : vector<32x1xf32> to vector<32x128xf32>
    %18 = arith.mulf %13, %17 : vector<32x128xf32>
    %c0_5 = arith.constant 0 : index
    %c0_6 = arith.constant 0 : index
    %19 = vector.load %arg2[%c0_5, %c0_6] : memref<1x128xf32, #tpu.memory_space<vmem>>, vector<1x128xf32>
    %20 = vector.broadcast %19 : vector<1x128xf32> to vector<32x128xf32>
    %21 = arith.mulf %18, %20 : vector<32x128xf32>
    %c0_7 = arith.constant 0 : index
    %c0_8 = arith.constant 0 : index
    %22 = vector.load %arg3[%c0_7, %c0_8] : memref<1x128xf32, #tpu.memory_space<vmem>>, vector<1x128xf32>
    %23 = vector.broadcast %22 : vector<1x128xf32> to vector<32x128xf32>
    %24 = arith.addf %21, %23 : vector<32x128xf32>
    %25 = arith.truncf %24 : vector<32x128xf32> to vector<32x128xbf16>
    %c0_9 = arith.constant 0 : index
    %c0_10 = arith.constant 0 : index
    %26 = vector.load %arg4[%c0_9, %c0_10] : memref<32x128xbf16, #tpu.memory_space<vmem>>, vector<32x128xbf16>
    tpu.vector_store %arg4[%c0_9, %c0_10], %25 {strides = array<i32>} : memref<32x128xbf16, #tpu.memory_space<vmem>>, vector<32x128xbf16>,
    return
  }
  func.func @transform_0(%arg0: i32) -> (i32, i32) {
    %c0_i32 = arith.constant 0 : i32
    %c0_i32_0 = arith.constant 0 : i32
    return %arg0, %c0_i32 : i32, i32
  }
  func.func @transform_1(%arg0: i32) -> (i32, i32) {
    %c0_i32 = arith.constant 0 : i32
    %c0_i32_0 = arith.constant 0 : i32
    %c0_i32_1 = arith.constant 0 : i32
    return %c0_i32, %c0_i32_0 : i32, i32
  }
  func.func @transform_2(%arg0: i32) -> (i32, i32) {
    %c0_i32 = arith.constant 0 : i32
    %c0_i32_0 = arith.constant 0 : i32
    %c0_i32_1 = arith.constant 0 : i32
    return %c0_i32, %c0_i32_0 : i32, i32
  }
  func.func @transform_3(%arg0: i32) -> (i32, i32) {
    %c0_i32 = arith.constant 0 : i32
    %c0_i32_0 = arith.constant 0 : i32
    return %arg0, %c0_i32 : i32, i32
  }
}

</mosaic_0001>

<llo_original>
// kernel: tpu_custom_call.1
$region0: #{tpu_custom_call.1}
  #allocation0 [shape = 'u32[]', space=smem, size = 0x4, offset = 0x4, fixed_abs, tag = 'smem constant byte address 0x4 - core index']
  #allocation1 [shape = 'u32[72,128]{1,0:T(1,128)}', space=vmem, size = 0x9000, scoped, tag = 'internal scratch']
  %s0 = inlined_call_operand.hbm [shape: f32[32,128], index: 0, kind: input, shape index: {}]
  %s1 = inlined_call_operand.hbm [shape: f32[1,128], index: 1, kind: input, shape index: {}]
  %s2 = inlined_call_operand.vmem [shape: f32[1,128], index: 2, kind: input, shape index: {}]
  %s3 = inlined_call_operand.hbm [shape: bf16[32,128], index: 3, kind: output, shape index: {}]
  %s4 = sld [smem:[#allocation0]]
  $region30: #{tpu_custom_call.1} parent=0
    _
  %s6 = ssub.s32 1, %s4
  %s7 = scalar_select 0, %s6, %s4
  $region1: #{tpu_custom_call.1} parent=0
    #allocation2 [shape = 'u8[16384]{0}', space=vmem, size = 0x4000, scoped, tag = 'input window, operand 0, single buffered']
    #allocation3 [shape = 's32[1]{0}', space=sflag, size = 0x4, scoped, tag = 'scoped memory for tpu_custom_call.1']
    #allocation4 [shape = 's32[1]{0}', space=sflag, size = 0x4, scoped, tag = 'scoped memory for tpu_custom_call.1']
    #allocation5 [shape = 'u8[512]{0}', space=vmem, size = 0x400, scoped, tag = 'input window, operand 1, single buffered']
    #allocation6 [shape = 's32[1]{0}', space=sflag, size = 0x4, scoped, tag = 'scoped memory for tpu_custom_call.1']
    #allocation7 [shape = 'u8[8192]{0}', space=vmem, size = 0x2000, scoped, tag = 'output window, operand 0, single buffered']
    %8 = vsyncpa [#allocation3], 0
    %9 = vsyncpa [#allocation6], 0
    %10 = vsyncpa [#allocation4], 0
    // Predicated region
    $region2: #{tpu_custom_call.1} parent=1 // pred_check
      _
    $region3: #{tpu_custom_call.1} parent=1 // pred_check_branch
      %12 = sbr.rel (0) target = $region5
    $region4: #{tpu_custom_call.1} parent=1 // pred_region
      %14 = vsyncadd [#allocation3], 0
      %s15 = sshll.u32 %s0, 4
      %s16 = int_to_ptr.hbm [resolvable:$true] %s15
      %s17 = sshll.u32 [#allocation2], 4
      %s18 = int_to_ptr.vmem [resolvable:$true] %s17
      %23 = dma.hbm_to_vmem [thread:$0]  %s16, 512, %s18, [#allocation3], 128, 128, 8
    $region5: #{tpu_custom_call.1} parent=1 // pred_fallthru
      _
    // Predicated region
    $region6: #{tpu_custom_call.1} parent=1 // pred_check
      _
    $region7: #{tpu_custom_call.1} parent=1 // pred_check_branch
      %25 = sbr.rel (0) target = $region9
    $region8: #{tpu_custom_call.1} parent=1 // pred_region
      %27 = vsyncadd [#allocation6], 0
      %s29 = sshll.u32 %s1, 4
      %s30 = int_to_ptr.hbm [resolvable:$true] %s29
      %s31 = sshll.u32 [#allocation5], 4
      %s32 = int_to_ptr.vmem [resolvable:$true] %s31
      %34 = dma.hbm_to_vmem [thread:$0]  %s30, 16, %s32, [#allocation6]
    $region9: #{tpu_custom_call.1} parent=1 // pred_fallthru
      _
    // Predicated region
    $region10: #{tpu_custom_call.1} parent=1 // pred_check
      _
    $region11: #{tpu_custom_call.1} parent=1 // pred_check_branch
      %36 = sbr.rel (0) target = $region13
    $region12: #{tpu_custom_call.1} parent=1 // pred_region
      _
    $region13: #{tpu_custom_call.1} parent=1 // pred_fallthru
      _
    // Predicated region
    $region14: #{tpu_custom_call.1} parent=1 // pred_check
      _
    $region15: #{tpu_custom_call.1} parent=1 // pred_check_branch
      %38 = sbr.rel (0) target = $region17
    $region16: #{tpu_custom_call.1} parent=1 // pred_region
      %40 = dma.done [#allocation3], 512
    $region17: #{tpu_custom_call.1} parent=1 // pred_fallthru
      _
    // Predicated region
    $region18: #{tpu_custom_call.1} parent=1 // pred_check
      _
    $region19: #{tpu_custom_call.1} parent=1 // pred_check_branch
      %42 = sbr.rel (0) target = $region21
    $region20: #{tpu_custom_call.1} parent=1 // pred_region
      %44 = dma.done [#allocation6], 16
    $region21: #{tpu_custom_call.1} parent=1 // pred_fallthru
      _
    %v45 = vld [vmem:[#allocation2] sm:$0xff]
    %v46 = vld [vmem:[#allocation2 + $0x8] sm:$0xff]
    %v47 = vld [vmem:[#allocation2 + $0x10] sm:$0xff]
    %v48 = vld [vmem:[#allocation2 + $0x18] sm:$0xff]
    %49 = vadd.xlane.f32.xlu0 %v45
    %v50 = vpop.xlane.xlu0 %49
    %51 = vadd.xlane.f32.xlu0 %v46
    %v52 = vpop.xlane.xlu0 %51
    %53 = vadd.xlane.f32.xlu0 %v47
    %v54 = vpop.xlane.xlu0 %53
    %55 = vadd.xlane.f32.xlu0 %v48
    %v56 = vpop.xlane.xlu0 %55
    %v57 = vrcp.pop 128.0
    %v58 = vmul.f32 128.0, %v57
    %v59 = vsub.f32 1.0, %v58
    %v60 = vmul.f32 %v57, %v59
    %v61 = vadd.f32 %v57, %v60
    %vm62 = vweird.f32 %v57
    %v63 = vsel %vm62, %v57, %v61
    %v64 = vmul.f32 %v50, %v63
    %v65 = vmul.f32 %v52, %v63
    %v66 = vmul.f32 %v54, %v63
    %v67 = vmul.f32 %v56, %v63
    %v68 = vsub.f32 %v45, %v64
    %v69 = vsub.f32 %v46, %v65
    %v70 = vsub.f32 %v47, %v66
    %v71 = vsub.f32 %v48, %v67
    %v72 = vmul.f32 %v68, %v68
    %v73 = vmul.f32 %v69, %v69
    %v74 = vmul.f32 %v70, %v70
    %v75 = vmul.f32 %v71, %v71
    %76 = vadd.xlane.f32.xlu0 %v72
    %v77 = vpop.xlane.xlu0 %76
    %78 = vadd.xlane.f32.xlu0 %v73
    %v79 = vpop.xlane.xlu0 %78
    %80 = vadd.xlane.f32.xlu0 %v74
    %v81 = vpop.xlane.xlu0 %80
    %82 = vadd.xlane.f32.xlu0 %v75
    %v83 = vpop.xlane.xlu0 %82
    %v84 = vmul.f32 %v77, %v63
    %v85 = vmul.f32 %v79, %v63
    %v86 = vmul.f32 %v81, %v63
    %v87 = vmul.f32 %v83, %v63
    %v88 = vadd.f32 %v84, 1e-12
    %v89 = vadd.f32 %v85, 1e-12
    %v90 = vadd.f32 %v86, 1e-12
    %v91 = vadd.f32 %v87, 1e-12
    %v92 = vrsqrt.pop %v88
    %v93 = vmul.f32 %v92, %v88
    %v94 = vmul.f32 %v93, %v92
    %v95 = vmul.f32 0.5, %v94
    %v96 = vsub.f32 1.5, %v95
    %v97 = vmul.f32 %v92, %v96
    %vm98 = vweird.f32 %v88
    %vm99 = vweird.f32 %v92
    %vm100 = vmor %vm98, %vm99
    %v101 = vsel %vm100, %v92, %v97
    %v102 = vrsqrt.pop %v89
    %v103 = vmul.f32 %v102, %v89
    %v104 = vmul.f32 %v103, %v102
    %v105 = vmul.f32 0.5, %v104
    %v106 = vsub.f32 1.5, %v105
    %v107 = vmul.f32 %v102, %v106
    %vm108 = vweird.f32 %v89
    %vm109 = vweird.f32 %v102
    %vm110 = vmor %vm108, %vm109
    %v111 = vsel %vm110, %v102, %v107
    %v112 = vrsqrt.pop %v90
    %v113 = vmul.f32 %v112, %v90
    %v114 = vmul.f32 %v113, %v112
    %v115 = vmul.f32 0.5, %v114
    %v116 = vsub.f32 1.5, %v115
    %v117 = vmul.f32 %v112, %v116
    %vm118 = vweird.f32 %v90
    %vm119 = vweird.f32 %v112
    %vm120 = vmor %vm118, %vm119
    %v121 = vsel %vm120, %v112, %v117
    %v122 = vrsqrt.pop %v91
    %v123 = vmul.f32 %v122, %v91
    %v124 = vmul.f32 %v123, %v122
    %v125 = vmul.f32 0.5, %v124
    %v126 = vsub.f32 1.5, %v125
    %v127 = vmul.f32 %v122, %v126
    %vm128 = vweird.f32 %v91
    %vm129 = vweird.f32 %v122
    %vm130 = vmor %vm128, %vm129
    %v131 = vsel %vm130, %v122, %v127
    %v132 = vmul.f32 %v68, %v101
    %v133 = vmul.f32 %v69, %v111
    %v134 = vmul.f32 %v70, %v121
    %v135 = vmul.f32 %v71, %v131
    %v136 = vld [vmem:[#allocation5] sm:$0x1]
    %v138 = vperm.slane %v136, 0
    %v140 = vmul.f32 %v132, %v138
    %v141 = vmul.f32 %v133, %v138
    %v142 = vmul.f32 %v134, %v138
    %v143 = vmul.f32 %v135, %v138
    %v144 = vld [vmem:[%s2] sm:$0x1]
    %v146 = vperm.slane %v144, 0
    %v148 = vadd.f32 %v140, %v146
    %v149 = vadd.f32 %v141, %v146
    %v150 = vadd.f32 %v142, %v146
    %v151 = vadd.f32 %v143, %v146
    %v152 = vpack.c.bf16 %v148, %v148
    %v153 = vpack.c.bf16 %v149, %v149
    %v154 = vpack.c.bf16 %v150, %v150
    %v155 = vpack.c.bf16 %v151, %v151
    %156 = vst [vmem:[#allocation7] sm:$0xf] %v152
    %157 = vst [vmem:[#allocation7 + $0x4] sm:$0xf] %v153
    %158 = vst [vmem:[#allocation7 + $0x8] sm:$0xf] %v154
    %159 = vst [vmem:[#allocation7 + $0xc] sm:$0xf] %v155
    // Predicated region
    $region22: #{tpu_custom_call.1} parent=1 // pred_check
      _
    $region23: #{tpu_custom_call.1} parent=1 // pred_check_branch
      %161 = sbr.rel (0) target = $region25
    $region24: #{tpu_custom_call.1} parent=1 // pred_region
      %163 = vsyncadd [#allocation4], 0
      %s164 = sshll.u32 [#allocation7], 4
      %s165 = int_to_ptr.vmem [resolvable:$true] %s164
      %s166 = sshll.u32 %s3, 4
      %s167 = int_to_ptr.hbm [resolvable:$true] %s166
      %172 = dma.vmem_to_hbm [thread:$0]  %s165, 256, %s167, [#allocation4], 64, 64, 4
    $region25: #{tpu_custom_call.1} parent=1 // pred_fallthru
      _
    // Predicated region
    $region26: #{tpu_custom_call.1} parent=1 // pred_check
      _
    $region27: #{tpu_custom_call.1} parent=1 // pred_check_branch
      %174 = sbr.rel (0) target = $region29
    $region28: #{tpu_custom_call.1} parent=1 // pred_region
      %176 = dma.done [#allocation4], 256
    $region29: #{tpu_custom_call.1} parent=1 // pred_fallthru
      _
    %177 = vsyncpa [#allocation3], 1
    %178 = vsyncpa [#allocation6], 1
    %179 = vsyncpa [#allocation4], 1

</llo_original>
